<compile_context>
chip_gen: v7x
topology: tpu7x:2x2x1
jax: 0.10.0
libtpu: 0.0.40
codegen_flags: <defaults>
</compile_context>

<pallas_src>
import jax
import jax.numpy as jnp
from jax.experimental import pallas as pl
from jax.experimental.pallas import tpu as pltpu


def _round_up(n, m):
    return ((n + m - 1) // m) * m


def _vmem_capacity_bytes():
    try:
        return int(pltpu.get_tpu_info().vmem_capacity_bytes)
    except Exception:
        return 64 << 20  # conservative default: v7x per-TensorCore VMEM


def _block_spec(shape, index_map, single_buffer=False):
    """BlockSpec helper; single_buffer=True requests pl.Buffered(1) for
    blocks whose index_map is constant (resident weights)."""
    if single_buffer:
        try:
            return pl.BlockSpec(shape, index_map, pipeline_mode=pl.Buffered(1))
        except Exception:
            pass  # older API without pipeline_mode: fall back to default
    return pl.BlockSpec(shape, index_map)


def _tile_vmem_bytes(tm, tn, d_in, n_pad, x_sz, w_sz, out_sz):
    w_bufs = 1 if tn == n_pad else 2        # resident W is single-buffered
    return (2 * tm * d_in * x_sz            # double-buffered x tiles
            + 2 * tm * tn * out_sz          # double-buffered out tiles
            + w_bufs * d_in * tn * w_sz     # W_cat tile(s)
            + w_bufs * 8 * tn * 4)          # b_cat tile(s), sublane-padded


def _select_tiles(B, d_in, n_pad, x_sz, w_sz, out_sz, vmem_cap):
    budget = int(vmem_cap * 0.8)            # ~51 MiB on v7x, ~102 MiB on v5e/v6e
    tm_cap = 1024 if vmem_cap >= (96 << 20) else 512
    m = n_pad // 128
    tn_cands = [128 * d for d in range(m, 0, -1) if m % d == 0]  # divisors of N_pad
    tm = min(tm_cap, _round_up(B, 8))
    ti = 0
    while _tile_vmem_bytes(tm, tn_cands[ti], d_in, n_pad, x_sz, w_sz, out_sz) > budget:
        tn = tn_cands[ti]
        w_bytes = (1 if tn == n_pad else 2) * d_in * tn * w_sz
        xo_bytes = 2 * tm * (d_in * x_sz + tn * out_sz)
        if ti + 1 < len(tn_cands) and w_bytes >= xo_bytes:
            ti += 1                          # W too big: tile N, stream W
        elif tm > 8:
            tm = max(8, _round_up(tm // 2, 8))
        elif ti + 1 < len(tn_cands):
            ti += 1
        else:
            # TODO(synk): add K-axis tiling with an f32 VMEM accumulator for
            # pathological D_in where even a single W column tile overflows VMEM.
            break
    return tm, tn_cands[ti]


def concat_net_kernel(x_ref, w_ref, b_ref, o_ref):
    """out_tile = x_tile @ W_cat_tile + b_cat_tile.

    torch.cat(dim=1) is encoded in W_cat's column layout, so the module is one
    MXU matmul + bias add per tile, stored with one lane-dense unmasked vst."""
    x = x_ref[...]
    w = w_ref[...]
    if x.dtype != w.dtype:
        # bf16 weight path: x stays f32 in HBM; cast here is VPU work that
        # hides under the MXU/DMA (halves x's HBM traffic vs wrapper cast).
        x = x.astype(w.dtype)
    acc = jnp.dot(x, w, preferred_element_type=jnp.float32)
    o_ref[...] = (acc + b_ref[...]).astype(o_ref.dtype)


def prepare_concat_net_params(w1, b1, w2, b2, w3, b3, *, use_bf16=False):
    """One-time parameter prep (hoisted out of the per-forward path): fuse the
    three Linear layers into W_cat/b_cat, cast, and pad the lane dim to 128."""
    D_in = w1.shape[0]
    H_total = w1.shape[1] + w2.shape[1] + w3.shape[1]
    N_pad = _round_up(H_total, 128)
    w_dt = jnp.bfloat16 if use_bf16 else jnp.float32

    w_cat = jnp.concatenate([w1, w2, w3], axis=1).astype(w_dt)
    b_cat = jnp.concatenate(
        [b1.reshape(1, -1), b2.reshape(1, -1), b3.reshape(1, -1)],
        axis=1).astype(jnp.float32)
    if N_pad != H_total:
        w_cat = jnp.zeros((D_in, N_pad), w_dt).at[:, :H_total].set(w_cat)
        b_cat = jnp.zeros((1, N_pad), jnp.float32).at[:, :H_total].set(b_cat)
    return {"w": w_cat, "b": b_cat, "d_in": D_in, "h_total": H_total}


def concat_net(params, x, *, out_dtype=jnp.float32, force_pallas=False):
    """Forward pass equivalent to cat(net1(x), net2(x), net3(x), dim=1)."""
    w_p, b_p = params["w"], params["b"]
    D_in, H_total = params["d_in"], params["h_total"]
    B = x.shape[0]
    assert x.shape[1] == D_in
    N_pad = w_p.shape[1]

    # Small-problem bypass: kernel launch + padding dominate; one XLA dot wins.
    if not force_pallas and B * D_in <= 128 * 128 and B * N_pad <= 128 * 128:
        out = jnp.dot(x.astype(w_p.dtype), w_p,
                      preferred_element_type=jnp.float32) + b_p
        return out[:, :H_total].astype(out_dtype)

    x_sz = x.dtype.itemsize
    w_sz = w_p.dtype.itemsize
    out_sz = jnp.dtype(out_dtype).itemsize
    vmem_cap = _vmem_capacity_bytes()

    TM, TN = _select_tiles(B, D_in, N_pad, x_sz, w_sz, out_sz, vmem_cap)

    # Prefer a slightly smaller batch tile that divides B over padding a copy of x.
    if B % TM != 0:
        for cand in range(TM, max(8, TM // 2) - 1, -8):
            if B % cand == 0:
                TM = cand
                break
    B_pad = _round_up(B, TM)

    # v7x megacore: ensure >=2 steps on the parallel batch axis so the second
    # TensorCore isn't idle (harmless on single-TC v5e/v6e).
    if B_pad // TM < 2 and TM >= 512:
        TM = _round_up(TM // 2, 8)
        B_pad = _round_up(B, TM)

    grid_b = B_pad // TM
    grid_n = N_pad // TN
    w_resident = grid_n == 1  # W fits: keep it resident and single-buffered

    # x no-pad fast path: only materialize a padded copy when truly needed.
    x_in = x if B_pad == B else jnp.zeros((B_pad, D_in), x.dtype).at[:B].set(x)

    needed = _tile_vmem_bytes(TM, TN, D_in, N_pad, x_sz, w_sz, out_sz)
    vmem_limit = min(int(vmem_cap * 0.9), max(32 << 20, needed + (4 << 20)))

    # Grid: N (weight) axis outer so a streamed W tile is fetched once and
    # reused across all batch tiles; batch axis inner. Both are independent.
    out_p = pl.pallas_call(
        concat_net_kernel,
        out_shape=jax.ShapeDtypeStruct((B_pad, N_pad), out_dtype),
        grid_spec=pltpu.PrefetchScalarGridSpec(
            num_scalar_prefetch=0,
            grid=(grid_n, grid_b),
            in_specs=[
                pl.BlockSpec((TM, D_in), lambda j, i: (i, 0)),                # x
                _block_spec((D_in, TN), lambda j, i: (0, j), w_resident),     # W_cat
                _block_spec((1, TN), lambda j, i: (0, j), w_resident),        # b_cat
            ],
            out_specs=pl.BlockSpec((TM, TN), lambda j, i: (i, j)),
        ),
        compiler_params=pltpu.CompilerParams(
            dimension_semantics=("parallel", "parallel"),
            vmem_limit_bytes=int(vmem_limit),
        ),
    )(x_in, w_p, b_p)

    if B_pad == B and N_pad == H_total:
        return out_p                 # fully aligned: no extra output-slice pass
    return out_p[:B, :H_total]


def _init_linear(key, in_f, out_f):
    """Deterministic init matching nn.Linear's uniform(-1/sqrt(in), 1/sqrt(in))."""
    kw, kb = jax.random.split(key)
    bound = 1.0 / (in_f ** 0.5)
    w = jax.random.uniform(kw, (in_f, out_f), jnp.float32, -bound, bound)
    b = jax.random.uniform(kb, (1, out_f), jnp.float32, -bound, bound)
    return w, b


if __name__ == "__main__":
    key = jax.random.PRNGKey(0)
    k_x, k1, k2, k3, k_x2 = jax.random.split(key, 5)

    # --- config 1: small, unaligned H_total (16+24+8=48) -> pad/slice path ---
    B, D_in = 8, 32
    H1, H2, H3 = 16, 24, 8
    x = jax.random.normal(k_x, (B, D_in), jnp.float32)
    w1, b1 = _init_linear(k1, D_in, H1)
    w2, b2 = _init_linear(k2, D_in, H2)
    w3, b3 = _init_linear(k3, D_in, H3)
    ref = jnp.concatenate([x @ w1 + b1, x @ w2 + b2, x @ w3 + b3], axis=1)

    params = prepare_concat_net_params(w1, b1, w2, b2, w3, b3)  # one-time prep
    out = jax.block_until_ready(concat_net(params, x, force_pallas=True))
    assert out.shape == (B, H1 + H2 + H3)
    assert jnp.allclose(out, ref, atol=1e-5, rtol=1e-5)

    # Small-problem XLA bypass gives the same answer.
    out_xla = jax.block_until_ready(concat_net(params, x))
    assert jnp.allclose(out_xla, ref, atol=1e-5, rtol=1e-5)

    # --- config 2: lane-aligned H_total (=128) -> no-pad / no-slice fast path ---
    B2, D2 = 16, 64
    G1, G2, G3 = 64, 32, 32
    x2 = jax.random.normal(k_x2, (B2, D2), jnp.float32)
    v1, c1 = _init_linear(k1, D2, G1)
    v2, c2 = _init_linear(k2, D2, G2)
    v3, c3 = _init_linear(k3, D2, G3)
    ref2 = jnp.concatenate([x2 @ v1 + c1, x2 @ v2 + c2, x2 @ v3 + c3], axis=1)

    params2 = prepare_concat_net_params(v1, c1, v2, c2, v3, c3)
    out2 = jax.block_until_ready(concat_net(params2, x2, force_pallas=True))
    assert out2.shape == (B2, G1 + G2 + G3)
    assert jnp.allclose(out2, ref2, atol=1e-5, rtol=1e-5)

    # --- bf16 weight path (x cast in-kernel, f32 accumulate), looser tol ---
    params_bf16 = prepare_concat_net_params(v1, c1, v2, c2, v3, c3, use_bf16=True)
    out_bf16 = jax.block_until_ready(
        concat_net(params_bf16, x2, force_pallas=True))
    assert jnp.allclose(out_bf16, ref2, atol=5e-2, rtol=5e-2)

    print("KERNEL_OK")
</pallas_src>

<mosaic_0001>
module attributes {stable_mosaic.version = 11 : i64} {
  func.func @concat_net_kernel(%arg0: i32, %arg1: i32, %arg2: memref<8x32xf32, #tpu.memory_space<vmem>>, %arg3: memref<32x128xf32, #tpu.memory_space<vmem>>, %arg4: memref<1x128xf32, #tpu.memory_space<vmem>>, %arg5: memref<8x128xf32, #tpu.memory_space<vmem>>) attributes {dimension_semantics = [#tpu.dimension_semantics<parallel>, #tpu.dimension_semantics<parallel>], iteration_bounds = array<i64: 1, 1>, scalar_prefetch = 0 : i64, scratch_operands = 0 : i64, tpu.core_type = #tpu.core_type<tc>, window_params = [{transform_indices = @transform_0, window_bounds = array<i64: 8, 32>}, {pipeline_mode = #tpu.pipeline_mode<synchronous>, transform_indices = @transform_1, window_bounds = array<i64: 32, 128>}, {pipeline_mode = #tpu.pipeline_mode<synchronous>, transform_indices = @transform_2, window_bounds = array<i64: 1, 128>}, {transform_indices = @transform_3, window_bounds = array<i64: 8, 128>}]} {
    %c0 = arith.constant 0 : index
    %c0_0 = arith.constant 0 : index
    %0 = vector.load %arg2[%c0, %c0_0] : memref<8x32xf32, #tpu.memory_space<vmem>>, vector<8x32xf32>
    %c0_1 = arith.constant 0 : index
    %c0_2 = arith.constant 0 : index
    %1 = vector.load %arg3[%c0_1, %c0_2] : memref<32x128xf32, #tpu.memory_space<vmem>>, vector<32x128xf32>
    %cst = arith.constant dense<0.000000e+00> : vector<8x128xf32>
    %2 = tpu.matmul %0, %1, %cst {dimension_numbers = #tpu.dot_dimension_numbers<[1], [0], [0], [1], [0, 0, 1, 1], [], []>} : vector<8x32xf32>, vector<32x128xf32>, vector<8x128xf32> -> vector<8x128xf32>
    %c0_3 = arith.constant 0 : index
    %c0_4 = arith.constant 0 : index
    %3 = vector.load %arg4[%c0_3, %c0_4] : memref<1x128xf32, #tpu.memory_space<vmem>>, vector<1x128xf32>
    %4 = vector.broadcast %3 : vector<1x128xf32> to vector<8x128xf32>
    %5 = arith.addf %2, %4 : vector<8x128xf32>
    %c0_5 = arith.constant 0 : index
    %c0_6 = arith.constant 0 : index
    %6 = vector.load %arg5[%c0_5, %c0_6] : memref<8x128xf32, #tpu.memory_space<vmem>>, vector<8x128xf32>
    tpu.vector_store %arg5[%c0_5, %c0_6], %5 {strides = array<i32>} : memref<8x128xf32, #tpu.memory_space<vmem>>, vector<8x128xf32>,
    return
  }
  func.func @transform_0(%arg0: i32, %arg1: i32) -> (i32, i32) {
    %c0_i32 = arith.constant 0 : i32
    %c0_i32_0 = arith.constant 0 : i32
    return %arg1, %c0_i32 : i32, i32
  }
  func.func @transform_1(%arg0: i32, %arg1: i32) -> (i32, i32) {
    %c0_i32 = arith.constant 0 : i32
    %c0_i32_0 = arith.constant 0 : i32
    return %c0_i32, %arg0 : i32, i32
  }
  func.func @transform_2(%arg0: i32, %arg1: i32) -> (i32, i32) {
    %c0_i32 = arith.constant 0 : i32
    %c0_i32_0 = arith.constant 0 : i32
    return %c0_i32, %arg0 : i32, i32
  }
  func.func @transform_3(%arg0: i32, %arg1: i32) -> (i32, i32) {
    %c0_i32 = arith.constant 0 : i32
    return %arg1, %arg0 : i32, i32
  }
}

</mosaic_0001>

<llo_original>
// kernel: tpu_custom_call.1
$region0: #{tpu_custom_call.1}
  #allocation0 [shape = 'u32[]', space=smem, size = 0x4, offset = 0x4, fixed_abs, tag = 'smem constant byte address 0x4 - core index']
  #allocation1 [shape = 'u32[144,128]{1,0:T(1,128)}', space=vmem, size = 0x12000, scoped, tag = 'internal scratch']
  %s0 = inlined_call_operand.hbm [shape: f32[8,32], index: 0, kind: input, shape index: {}]
  %s1 = inlined_call_operand.hbm [shape: f32[32,128], index: 1, kind: input, shape index: {}]
  %s2 = inlined_call_operand.vmem [shape: f32[1,128], index: 2, kind: input, shape index: {}]
  %s3 = inlined_call_operand.hbm [shape: f32[8,128], index: 3, kind: output, shape index: {}]
  %s4 = sld [smem:[#allocation0]]
  $region30: #{tpu_custom_call.1} parent=0
    _
  %s6 = ssub.s32 1, %s4
  %s7 = scalar_select 0, %s6, %s4
  $region1: #{tpu_custom_call.1} parent=0
    #allocation2 [shape = 'u8[4096]{0}', space=vmem, size = 0x1000, scoped, tag = 'input window, operand 0, single buffered']
    #allocation3 [shape = 's32[1]{0}', space=sflag, size = 0x4, scoped, tag = 'scoped memory for tpu_custom_call.1']
    #allocation4 [shape = 's32[1]{0}', space=sflag, size = 0x4, scoped, tag = 'scoped memory for tpu_custom_call.1']
    #allocation5 [shape = 'u8[16384]{0}', space=vmem, size = 0x4000, scoped, tag = 'input window, operand 1, single buffered']
    #allocation6 [shape = 's32[1]{0}', space=sflag, size = 0x4, scoped, tag = 'scoped memory for tpu_custom_call.1']
    #allocation7 [shape = 'u8[4096]{0}', space=vmem, size = 0x1000, scoped, tag = 'output window, operand 0, single buffered']
    %8 = vsyncpa [#allocation3], 0
    %9 = vsyncpa [#allocation6], 0
    %10 = vsyncpa [#allocation4], 0
    // Predicated region
    $region2: #{tpu_custom_call.1} parent=1 // pred_check
      _
    $region3: #{tpu_custom_call.1} parent=1 // pred_check_branch
      %12 = sbr.rel (0) target = $region5
    $region4: #{tpu_custom_call.1} parent=1 // pred_region
      %s14 = ssub.s32 128, 128
      %15 = vsyncadd [#allocation3], %s14
      %s17 = sshll.u32 [#allocation2], 4
      %s18 = int_to_ptr.vmem [resolvable:$true] %s17
      %20 = dma.hbm_to_vmem [thread:$0]  %s0, 128, %s18, [#allocation3]
    $region5: #{tpu_custom_call.1} parent=1 // pred_fallthru
      _
    // Predicated region
    $region6: #{tpu_custom_call.1} parent=1 // pred_check
      _
    $region7: #{tpu_custom_call.1} parent=1 // pred_check_branch
      %22 = sbr.rel (0) target = $region9
    $region8: #{tpu_custom_call.1} parent=1 // pred_region
      %s24 = ssub.s32 512, 512
      %25 = vsyncadd [#allocation6], %s24
      %s26 = sshll.u32 [#allocation5], 4
      %s27 = int_to_ptr.vmem [resolvable:$true] %s26
      %32 = dma.hbm_to_vmem [thread:$0]  %s1, 512, %s27, [#allocation6], 128, 128, 8
    $region9: #{tpu_custom_call.1} parent=1 // pred_fallthru
      _
    // Predicated region
    $region10: #{tpu_custom_call.1} parent=1 // pred_check
      _
    $region11: #{tpu_custom_call.1} parent=1 // pred_check_branch
      %34 = sbr.rel (0) target = $region13
    $region12: #{tpu_custom_call.1} parent=1 // pred_region
      _
    $region13: #{tpu_custom_call.1} parent=1 // pred_fallthru
      _
    // Predicated region
    $region14: #{tpu_custom_call.1} parent=1 // pred_check
      _
    $region15: #{tpu_custom_call.1} parent=1 // pred_check_branch
      %36 = sbr.rel (0) target = $region17
    $region16: #{tpu_custom_call.1} parent=1 // pred_region
      %37 = dma.done [#allocation3], 128
    $region17: #{tpu_custom_call.1} parent=1 // pred_fallthru
      _
    // Predicated region
    $region18: #{tpu_custom_call.1} parent=1 // pred_check
      _
    $region19: #{tpu_custom_call.1} parent=1 // pred_check_branch
      %39 = sbr.rel (0) target = $region21
    $region20: #{tpu_custom_call.1} parent=1 // pred_region
      %40 = dma.done [#allocation6], 512
    $region21: #{tpu_custom_call.1} parent=1 // pred_fallthru
      _
    %v41 = vld [vmem:[#allocation2] sm:$0xff]
    %v42 = vld [vmem:[#allocation5] sm:$0xff]
    %v43 = vld [vmem:[#allocation5 + $0x8] sm:$0xff]
    %v44 = vld [vmem:[#allocation5 + $0x10] sm:$0xff]
    %v45 = vld [vmem:[#allocation5 + $0x18] sm:$0xff]
    %v46 = vld [vmem:[%s2] sm:$0x1]
    %v48 = vlaneseq
    %v49 = vshrl.u32 %v48, 7
    %v50 = vsub.s32 0, %v49
    %v51 = vrot.slane %v46, %v50
    %vm53 = vcmask 261120
    %v55 = vsel %vm53, %v41, 0
    %57 = vmatprep.subr.mxu0 0.0
    %58 = vmatpush1.msra.mxu0 %v42
    %59 = vmatprep.subr.mxu0 0.0
    %60 = vmatpush1.msra.mxu0 %v43
    %61 = vmatprep.subr.mxu0 0.0
    %62 = vmatpush1.msra.mxu0 %v44
    %63 = vmatprep.subr.mxu0 0.0
    %64 = vmatpush1.msra.mxu0 %v45
    %65 = vmatprep.subr.mxu0 0.0
    %66 = vmatpush1.msra.mxu0 0.0
    %67 = vmatprep.subr.mxu0 0.0
    %68 = vmatpush1.msra.mxu0 0.0
    %69 = vmatprep.subr.mxu0 0.0
    %70 = vmatpush1.msra.mxu0 0.0
    %71 = vmatprep.subr.mxu0 0.0
    %72 = vmatpush1.msra.mxu0 0.0
    %73 = vmatprep.subr.mxu0 0.0
    %74 = vmatpush1.msra.mxu0 0.0
    %75 = vmatprep.subr.mxu0 0.0
    %76 = vmatpush1.msra.mxu0 0.0
    %77 = vmatprep.subr.mxu0 0.0
    %78 = vmatpush1.msra.mxu0 0.0
    %79 = vmatprep.subr.mxu0 0.0
    %80 = vmatpush1.msra.mxu0 0.0
    %81 = vmatprep.subr.mxu0 0.0
    %82 = vmatpush1.msra.mxu0 0.0
    %83 = vmatprep.subr.mxu0 0.0
    %84 = vmatpush1.msra.mxu0 0.0
    %85 = vmatprep.subr.mxu0 0.0
    %86 = vmatpush1.msra.mxu0 0.0
    %87 = vmatprep.subr.mxu0 0.0
    %88 = vmatpush1.msra.mxu0 0.0
    %89 = vmatprep.subr.mxu0 0.0
    %90 = vmatpush1.msra.mxu0 0.0
    %91 = vmatprep.subr.mxu0 0.0
    %92 = vmatpush1.msra.mxu0 0.0
    %93 = vmatprep.subr.mxu0 0.0
    %94 = vmatpush1.msra.mxu0 0.0
    %95 = vmatprep.subr.mxu0 0.0
    %96 = vmatpush1.msra.mxu0 0.0
    %97 = vmatprep.subr.mxu0 0.0
    %98 = vmatpush1.msra.mxu0 0.0
    %99 = vmatprep.subr.mxu0 0.0
    %100 = vmatpush1.msra.mxu0 0.0
    %101 = vmatprep.subr.mxu0 0.0
    %102 = vmatpush1.msra.mxu0 0.0
    %103 = vmatprep.subr.mxu0 0.0
    %104 = vmatpush1.msra.mxu0 0.0
    %105 = vmatprep.subr.mxu0 0.0
    %106 = vmatpush1.msra.mxu0 0.0
    %107 = vmatprep.subr.mxu0 0.0
    %108 = vmatpush1.msra.mxu0 0.0
    %109 = vmatprep.subr.mxu0 0.0
    %110 = vmatpush1.msra.mxu0 0.0
    %111 = vmatprep.subr.mxu0 0.0
    %112 = vmatpush1.msra.mxu0 0.0
    %113 = vmatprep.subr.mxu0 0.0
    %114 = vmatpush1.msra.mxu0 0.0
    %115 = vmatprep.subr.mxu0 0.0
    %116 = vmatpush1.msra.mxu0 0.0
    %117 = vmatprep.subr.mxu0 0.0
    %118 = vmatpush1.msra.mxu0 0.0
    %119 = vmatprep.subr.mxu0 0.0
    %120 = vmatpush1.msra.mxu0 0.0
    %121 = vmatprep.mubr.f32.mxu0 0.0
    %122 = vmatmul.mubr.f32.gmra.mrb[0].mxu0 %v55
    %v123 = vpop.f32.mrb[0].mxu0
    %v124 = vadd.f32 %v51, %v123
    %v125 = vpop.f32.mrb[0].mxu0
    %126 = vdwg.mxu0
    %127 = vst [vmem:[#allocation7] sm:$0xff] %v124
    // Predicated region
    $region22: #{tpu_custom_call.1} parent=1 // pred_check
      _
    $region23: #{tpu_custom_call.1} parent=1 // pred_check_branch
      %129 = sbr.rel (0) target = $region25
    $region24: #{tpu_custom_call.1} parent=1 // pred_region
      %s131 = ssub.s32 128, 128
      %132 = vsyncadd [#allocation4], %s131
      %s134 = sshll.u32 [#allocation7], 4
      %s135 = int_to_ptr.vmem [resolvable:$true] %s134
      %137 = dma.vmem_to_hbm [thread:$0]  %s135, 128, %s3, [#allocation4]
    $region25: #{tpu_custom_call.1} parent=1 // pred_fallthru
      _
    // Predicated region
    $region26: #{tpu_custom_call.1} parent=1 // pred_check
      _
    $region27: #{tpu_custom_call.1} parent=1 // pred_check_branch
      %139 = sbr.rel (0) target = $region29
    $region28: #{tpu_custom_call.1} parent=1 // pred_region
      %140 = dma.done [#allocation4], 128
    $region29: #{tpu_custom_call.1} parent=1 // pred_fallthru
      _
    %141 = vsyncpa [#allocation3], 1
    %142 = vsyncpa [#allocation6], 1
    %143 = vsyncpa [#allocation4], 1

</llo_original>
